<compile_context>
chip_gen: v6e
topology: v6e:2x2x1
jax: 0.10.0
libtpu: 0.0.40
codegen_flags: <defaults>
</compile_context>

<pallas_src>
import functools
from math import gcd

import jax
import jax.numpy as jnp
import numpy as np
from jax.experimental import pallas as pl
from jax.experimental.pallas import tpu as pltpu

_LANE = 128


def _reduce_gate_kernel(x_ref, w1t_ref, b1_ref, w2_ref, b2_ref, g_ref, acc_ref,
                        *, q_order, inv_s):
    """Pass 1: spatial-sum accumulation + tiny SelfONN gate at the last tile."""
    s_idx = pl.program_id(1)

    @pl.when(s_idx == 0)
    def _init():
        acc_ref[...] = jnp.zeros_like(acc_ref)

    # Partial per-channel sums for this spatial tile. The tile is read once and
    # immediately reduced -- no slab-sized live SSA value to spill.
    acc_ref[...] += jnp.sum(x_ref[0], axis=-1, keepdims=True)          # (C, 1)

    @pl.when(s_idx == pl.num_programs(1) - 1)
    def _finalize():
        m = acc_ref[...] * inv_s                                       # (C, 1) channel means

        # fc1 (C -> 2), SelfONN 'fast': conv1x1 over cat([m^1 .. m^q]).
        # W1 is pre-transposed host-side to (q*C, 2) so the power stack (q*C, 1)
        # broadcasts directly: one VPU multiply + one XLU sublane reduce -- no
        # padded MXU passes and no in-kernel transposes.
        p = m
        pows = [p]
        for _ in range(q_order - 1):
            p = p * m
            pows.append(p)
        m_pows = jnp.concatenate(pows, axis=0)                         # (q*C, 1)
        y1 = b1_ref[...] + jnp.sum(w1t_ref[...] * m_pows, axis=0, keepdims=True)
        y1 = jnp.tanh(y1)                                              # (1, 2)

        # fc2 (2 -> C): powers of y1 live on the lane axis and pair with W2 (C, q*2).
        p = y1
        pows = [p]
        for _ in range(q_order - 1):
            p = p * y1
            pows.append(p)
        y_pows = jnp.concatenate(pows, axis=1)                         # (1, q*2)
        y2 = b2_ref[...] + jnp.sum(w2_ref[...] * y_pows, axis=-1, keepdims=True)
        g_ref[0] = jax.nn.sigmoid(y2)                                  # (C, 1)


def _apply_gate_kernel(g_ref, x_ref, o_ref):
    """Pass 2: stream-through gating -- one load, one multiply, one store per vreg."""
    o_ref[0] = g_ref[0] * x_ref[0]


def _pick_lane_tile(sf_pad, rows, max_bytes=2 << 20):
    """Largest multiple-of-128 divisor of sf_pad whose (rows x tile) f32 buffer
    stays under max_bytes, keeping double-buffered blocks comfortably inside
    the scoped-VMEM default on v5e/v6e/v7x."""
    cap = max(_LANE, (max_bytes // (rows * 4)) // _LANE * _LANE)
    ts = _LANE
    t = _LANE
    while t <= min(sf_pad, cap):
        if sf_pad % t == 0:
            ts = t
        t += _LANE
    return ts


def selfcam_pallas(x, w1, b1, w2, b2, q_order):
    """x: (N, C, H, W) f32; w1: (2, q*C); b1: (2,); w2: (C, q*2); b2: (C,)."""
    N, C, H, W = x.shape
    S = H * W

    # Sublane fold factor: put KF spatial columns on the sublane axis so that
    # C*KF is a multiple of 8 (full vregs even for tiny C).
    KF = 8 // gcd(C, 8)
    CR = C * KF

    # Pad flattened spatial to a multiple of KF*128 so every tile in the folded
    # (N, CR, S/KF) view is lane-dense (unmasked vst). Zero padding is exact:
    # it adds nothing to the sums (we divide by the true S) and padded outputs
    # are sliced away.
    unit = KF * _LANE
    S_pad = -(-S // unit) * unit
    x2 = x.reshape(N, C, S)
    if S_pad != S:
        x2 = jnp.pad(x2, ((0, 0), (0, 0), (0, S_pad - S)))

    Sf = S_pad // KF                      # folded lane extent (multiple of 128)
    TS = _pick_lane_tile(Sf, CR)          # lanes per tile, folded view
    n_tiles = Sf // TS
    TS_UN = TS * KF                       # matching tile in the unfolded view

    x_un = x2                             # (N, C, S_pad)  : reduce pass
    x_fold = x2.reshape(N, CR, Sf)        # (N, CR, Sf)    : gating pass (same buffer)

    # Host-side (free) weight re-layout for the in-kernel VPU reductions.
    w1_t = jnp.transpose(w1)              # (q*C, 2)
    b1_r = b1.reshape(1, 2)
    b2_r = b2.reshape(C, 1)

    # ---- pass 1: per-channel mean + SelfONN gate ----------------------------
    reduce_kernel = functools.partial(_reduce_gate_kernel,
                                      q_order=q_order, inv_s=1.0 / S)
    gate = pl.pallas_call(
        reduce_kernel,
        out_shape=jax.ShapeDtypeStruct((N, C, 1), jnp.float32),
        grid_spec=pltpu.PrefetchScalarGridSpec(
            num_scalar_prefetch=0,
            grid=(N, n_tiles),
            in_specs=[
                pl.BlockSpec((1, C, TS_UN), lambda n, s: (n, 0, s)),    # x
                pl.BlockSpec((q_order * C, 2), lambda n, s: (0, 0)),    # W1^T
                pl.BlockSpec((1, 2), lambda n, s: (0, 0)),              # b1
                pl.BlockSpec((C, q_order * 2), lambda n, s: (0, 0)),    # W2
                pl.BlockSpec((C, 1), lambda n, s: (0, 0)),              # b2
            ],
            out_specs=pl.BlockSpec((1, C, 1), lambda n, s: (n, 0, 0)),
            scratch_shapes=[pltpu.VMEM((C, 1), jnp.float32)],
        ),
        compiler_params=pltpu.CompilerParams(
            dimension_semantics=("parallel", "arbitrary")),
        cost_estimate=pl.CostEstimate(
            flops=int(N * C * S_pad),
            transcendentals=int(N * (C + 2)),
            bytes_accessed=int(4 * N * C * S_pad)),
    )(x_un, w1_t, b1_r, w2, b2_r)

    # Repeat the per-channel gate KF times so it broadcasts over the folded
    # sublane layout (tiny: N*C*KF floats, plain XLA).
    gate_rep = jnp.repeat(gate, KF, axis=1) if KF > 1 else gate         # (N, CR, 1)

    # ---- pass 2: lane-dense, sublane-packed streaming gate ------------------
    out_f = pl.pallas_call(
        _apply_gate_kernel,
        out_shape=jax.ShapeDtypeStruct((N, CR, Sf), x.dtype),
        grid_spec=pltpu.PrefetchScalarGridSpec(
            num_scalar_prefetch=0,
            grid=(N, n_tiles),
            in_specs=[
                pl.BlockSpec((1, CR, 1), lambda n, s: (n, 0, 0)),       # gate
                pl.BlockSpec((1, CR, TS), lambda n, s: (n, 0, s)),      # x (folded)
            ],
            out_specs=pl.BlockSpec((1, CR, TS), lambda n, s: (n, 0, s)),
        ),
        compiler_params=pltpu.CompilerParams(
            dimension_semantics=("parallel", "parallel")),
        cost_estimate=pl.CostEstimate(
            flops=int(N * CR * Sf),
            transcendentals=0,
            bytes_accessed=int(8 * N * CR * Sf)),
        # TODO(synk): add input_output_aliases={1: 0} when the caller donates x.
    )(gate_rep, x_fold)

    out = out_f.reshape(N, C, S_pad)[:, :, :S]
    return out.reshape(N, C, H, W)


def selfcam_reference(x, w1, b1, w2, b2, q_order):
    """Plain-JAX reference mirroring the PyTorch module exactly."""
    N, C, H, W = x.shape
    m = jnp.mean(x, axis=(2, 3), keepdims=True)                         # (N,C,1,1)
    mp = jnp.concatenate([m ** (p + 1) for p in range(q_order)], axis=1)
    y1 = jnp.einsum('ok,nkij->noij', w1, mp) + b1.reshape(1, 2, 1, 1)
    y1 = jnp.tanh(y1)
    yp = jnp.concatenate([y1 ** (p + 1) for p in range(q_order)], axis=1)
    y2 = jnp.einsum('ck,nkij->ncij', w2, yp) + b2.reshape(1, C, 1, 1)
    gate = jax.nn.sigmoid(y2)
    return gate * x


if __name__ == "__main__":
    # SELFCAM(inchannels=4, q_order=3) on a small feature map.
    N, C, H, W = 2, 4, 16, 16
    Q = 3

    key = jax.random.PRNGKey(0)
    kx, k1, k2, k3, k4 = jax.random.split(key, 5)

    x = jax.random.normal(kx, (N, C, H, W), dtype=jnp.float32)

    # SelfONN2d 'fast' weights: conv1x1 over in_channels*q stacked powers.
    w1 = jax.random.normal(k1, (2, C * Q), dtype=jnp.float32) * 0.2
    b1 = jax.random.normal(k2, (2,), dtype=jnp.float32) * 0.1
    w2 = jax.random.normal(k3, (C, 2 * Q), dtype=jnp.float32) * 0.2
    b2 = jax.random.normal(k4, (C,), dtype=jnp.float32) * 0.1

    out = selfcam_pallas(x, w1, b1, w2, b2, Q)
    out = jax.block_until_ready(out)

    ref = selfcam_reference(x, w1, b1, w2, b2, Q)
    np.testing.assert_allclose(np.asarray(out), np.asarray(ref),
                               rtol=1e-5, atol=1e-5)

    print("KERNEL_OK")
</pallas_src>

<mosaic_0001>
module attributes {stable_mosaic.version = 11 : i64} {
  func.func @_reduce_gate_kernel(%arg0: i32, %arg1: i32, %arg2: memref<1x4x256xf32, #tpu.memory_space<vmem>>, %arg3: memref<12x2xf32, #tpu.memory_space<vmem>>, %arg4: memref<1x2xf32, #tpu.memory_space<vmem>>, %arg5: memref<4x6xf32, #tpu.memory_space<vmem>>, %arg6: memref<4x1xf32, #tpu.memory_space<vmem>>, %arg7: memref<1x4x1xf32, #tpu.memory_space<vmem>>, %arg8: memref<4x1xf32, #tpu.memory_space<vmem>>) attributes {dimension_semantics = [#tpu.dimension_semantics<parallel>, #tpu.dimension_semantics<arbitrary>], iteration_bounds = array<i64: 2, 1>, scalar_prefetch = 0 : i64, scratch_operands = 1 : i64, tpu.core_type = #tpu.core_type<tc>, window_params = [{transform_indices = @transform_0, window_bounds = array<i64: 1, 4, 256>}, {pipeline_mode = #tpu.pipeline_mode<synchronous>, transform_indices = @transform_1, window_bounds = array<i64: 12, 2>}, {pipeline_mode = #tpu.pipeline_mode<synchronous>, transform_indices = @transform_2, window_bounds = array<i64: 1, 2>}, {pipeline_mode = #tpu.pipeline_mode<synchronous>, transform_indices = @transform_3, window_bounds = array<i64: 4, 6>}, {pipeline_mode = #tpu.pipeline_mode<synchronous>, transform_indices = @transform_4, window_bounds = array<i64: 4, 1>}, {transform_indices = @transform_5, window_bounds = array<i64: 1, 4, 1>}]} {
    %c0_i32 = arith.constant 0 : i32
    %0 = arith.cmpi eq, %arg1, %c0_i32 : i32
    %1 = arith.extui %0 : i1 to i32
    %c0_i32_0 = arith.constant 0 : i32
    %2 = arith.cmpi ne, %1, %c0_i32_0 : i32
    scf.if %2 {
      %cst_9 = arith.constant 0.000000e+00 : f32
      %13 = vector.broadcast %cst_9 : f32 to vector<4x1xf32>
      %c0_10 = arith.constant 0 : index
      %c0_11 = arith.constant 0 : index
      %14 = vector.load %arg8[%c0_10, %c0_11] : memref<4x1xf32, #tpu.memory_space<vmem>>, vector<4x1xf32>
      tpu.vector_store %arg8[%c0_10, %c0_11], %13 {strides = array<i32>} : memref<4x1xf32, #tpu.memory_space<vmem>>, vector<4x1xf32>,
    } else {
    }
    %c0 = arith.constant 0 : index
    %c0_1 = arith.constant 0 : index
    %3 = vector.load %arg8[%c0, %c0_1] : memref<4x1xf32, #tpu.memory_space<vmem>>, vector<4x1xf32>
    %c0_2 = arith.constant 0 : index
    %c0_3 = arith.constant 0 : index
    %c0_4 = arith.constant 0 : index
    %4 = vector.load %arg2[%c0_2, %c0_3, %c0_4] : memref<1x4x256xf32, #tpu.memory_space<vmem>>, vector<1x4x256xf32>
    %5 = vector.shape_cast %4 : vector<1x4x256xf32> to vector<4x256xf32>
    %cst = arith.constant dense<0.000000e+00> : vector<4xf32>
    %6 = vector.multi_reduction <add>, %5, %cst [1] : vector<4x256xf32> to vector<4xf32>
    %7 = vector.shape_cast %6 : vector<4xf32> to vector<4x1xf32>
    %8 = arith.addf %3, %7 : vector<4x1xf32>
    %c0_5 = arith.constant 0 : index
    %c0_6 = arith.constant 0 : index
    %9 = vector.load %arg8[%c0_5, %c0_6] : memref<4x1xf32, #tpu.memory_space<vmem>>, vector<4x1xf32>
    tpu.vector_store %arg8[%c0_5, %c0_6], %8 {strides = array<i32>} : memref<4x1xf32, #tpu.memory_space<vmem>>, vector<4x1xf32>,
    %c0_i32_7 = arith.constant 0 : i32
    %10 = arith.cmpi eq, %arg1, %c0_i32_7 : i32
    %11 = arith.extui %10 : i1 to i32
    %c0_i32_8 = arith.constant 0 : i32
    %12 = arith.cmpi ne, %11, %c0_i32_8 : i32
    scf.if %12 {
      %c0_9 = arith.constant 0 : index
      %c0_10 = arith.constant 0 : index
      %13 = vector.load %arg8[%c0_9, %c0_10] : memref<4x1xf32, #tpu.memory_space<vmem>>, vector<4x1xf32>
      %cst_11 = arith.constant 3.906250e-03 : f32
      %14 = vector.broadcast %cst_11 : f32 to vector<4x1xf32>
      %15 = arith.mulf %13, %14 : vector<4x1xf32>
      %16 = arith.mulf %15, %15 : vector<4x1xf32>
      %17 = arith.mulf %16, %15 : vector<4x1xf32>
      %18 = tpu.concatenate %15, %16, %17 in 0 : vector<4x1xf32>, vector<4x1xf32>, vector<4x1xf32> -> vector<12x1xf32>
      %c0_12 = arith.constant 0 : index
      %c0_13 = arith.constant 0 : index
      %19 = vector.load %arg4[%c0_12, %c0_13] : memref<1x2xf32, #tpu.memory_space<vmem>>, vector<1x2xf32>
      %c0_14 = arith.constant 0 : index
      %c0_15 = arith.constant 0 : index
      %20 = vector.load %arg3[%c0_14, %c0_15] : memref<12x2xf32, #tpu.memory_space<vmem>>, vector<12x2xf32>
      %21 = vector.broadcast %18 : vector<12x1xf32> to vector<12x2xf32>
      %22 = arith.mulf %20, %21 : vector<12x2xf32>
      %cst_16 = arith.constant dense<0.000000e+00> : vector<2xf32>
      %23 = vector.multi_reduction <add>, %22, %cst_16 [0] : vector<12x2xf32> to vector<2xf32>
      %24 = vector.shape_cast %23 : vector<2xf32> to vector<1x2xf32>
      %25 = arith.addf %19, %24 : vector<1x2xf32>
      %26 = math.tanh %25 : vector<1x2xf32>
      %27 = arith.mulf %26, %26 : vector<1x2xf32>
      %28 = arith.mulf %27, %26 : vector<1x2xf32>
      %29 = tpu.concatenate %26, %27, %28 in 1 : vector<1x2xf32>, vector<1x2xf32>, vector<1x2xf32> -> vector<1x6xf32>
      %c0_17 = arith.constant 0 : index
      %c0_18 = arith.constant 0 : index
      %30 = vector.load %arg6[%c0_17, %c0_18] : memref<4x1xf32, #tpu.memory_space<vmem>>, vector<4x1xf32>
      %c0_19 = arith.constant 0 : index
      %c0_20 = arith.constant 0 : index
      %31 = vector.load %arg5[%c0_19, %c0_20] : memref<4x6xf32, #tpu.memory_space<vmem>>, vector<4x6xf32>
      %32 = vector.broadcast %29 : vector<1x6xf32> to vector<4x6xf32>
      %33 = arith.mulf %31, %32 : vector<4x6xf32>
      %cst_21 = arith.constant dense<0.000000e+00> : vector<4xf32>
      %34 = vector.multi_reduction <add>, %33, %cst_21 [1] : vector<4x6xf32> to vector<4xf32>
      %35 = vector.shape_cast %34 : vector<4xf32> to vector<4x1xf32>
      %36 = arith.addf %30, %35 : vector<4x1xf32>
      %37 = arith.negf %36 : vector<4x1xf32>
      %38 = math.exp %37 : vector<4x1xf32>
      %cst_22 = arith.constant 1.000000e+00 : f32
      %39 = vector.broadcast %cst_22 : f32 to vector<4x1xf32>
      %40 = arith.addf %39, %38 : vector<4x1xf32>
      %41 = arith.divf %39, %40 : vector<4x1xf32>
      %c0_23 = arith.constant 0 : index
      %c0_24 = arith.constant 0 : index
      %c0_25 = arith.constant 0 : index
      %42 = vector.load %arg7[%c0_23, %c0_24, %c0_25] : memref<1x4x1xf32, #tpu.memory_space<vmem>>, vector<1x4x1xf32>
      %43 = vector.shape_cast %42 : vector<1x4x1xf32> to vector<4x1xf32>
      %44 = vector.shape_cast %41 : vector<4x1xf32> to vector<1x4x1xf32>
      tpu.vector_store %arg7[%c0_23, %c0_24, %c0_25], %44 {strides = array<i32>} : memref<1x4x1xf32, #tpu.memory_space<vmem>>, vector<1x4x1xf32>,
    } else {
    }
    return
  }
  func.func @transform_0(%arg0: i32, %arg1: i32) -> (i32, i32, i32) {
    %c0_i32 = arith.constant 0 : i32
    %c0_i32_0 = arith.constant 0 : i32
    return %arg0, %c0_i32, %arg1 : i32, i32, i32
  }
  func.func @transform_1(%arg0: i32, %arg1: i32) -> (i32, i32) {
    %c0_i32 = arith.constant 0 : i32
    %c0_i32_0 = arith.constant 0 : i32
    %c0_i32_1 = arith.constant 0 : i32
    return %c0_i32, %c0_i32_0 : i32, i32
  }
  func.func @transform_2(%arg0: i32, %arg1: i32) -> (i32, i32) {
    %c0_i32 = arith.constant 0 : i32
    %c0_i32_0 = arith.constant 0 : i32
    %c0_i32_1 = arith.constant 0 : i32
    return %c0_i32, %c0_i32_0 : i32, i32
  }
  func.func @transform_3(%arg0: i32, %arg1: i32) -> (i32, i32) {
    %c0_i32 = arith.constant 0 : i32
    %c0_i32_0 = arith.constant 0 : i32
    %c0_i32_1 = arith.constant 0 : i32
    return %c0_i32, %c0_i32_0 : i32, i32
  }
  func.func @transform_4(%arg0: i32, %arg1: i32) -> (i32, i32) {
    %c0_i32 = arith.constant 0 : i32
    %c0_i32_0 = arith.constant 0 : i32
    %c0_i32_1 = arith.constant 0 : i32
    return %c0_i32, %c0_i32_0 : i32, i32
  }
  func.func @transform_5(%arg0: i32, %arg1: i32) -> (i32, i32, i32) {
    %c0_i32 = arith.constant 0 : i32
    %c0_i32_0 = arith.constant 0 : i32
    %c0_i32_1 = arith.constant 0 : i32
    return %arg0, %c0_i32, %c0_i32_0 : i32, i32, i32
  }
}

</mosaic_0001>

<llo_original>
// kernel: tpu_custom_call.1
$region0: #{tpu_custom_call.1}
  #allocation0 [shape = 'u32[]', space=smem, size = 0x4, offset = 0x4, fixed_abs, tag = 'smem constant byte address 0x4 - core index']
  #allocation1 [shape = 'u32[144,128]{1,0:T(1,128)}', space=vmem, size = 0x12000, scoped, tag = 'internal scratch']
  #allocation2 [shape = 'f32[4,1]{1,0:T(4,128)}', space=vmem, size = 0x800, scoped, tag = 'scratch operand']
  %s0 = inlined_call_operand.vmem [shape: f32[2,4,256], index: 0, kind: input, shape index: {}]
  %s1 = inlined_call_operand.vmem [shape: f32[12,2], index: 1, kind: input, shape index: {}]
  %s2 = inlined_call_operand.vmem [shape: f32[1,2], index: 2, kind: input, shape index: {}]
  %s3 = inlined_call_operand.vmem [shape: f32[4,6], index: 3, kind: input, shape index: {}]
  %s4 = inlined_call_operand.vmem [shape: f32[4,1], index: 4, kind: input, shape index: {}]
  %s5 = inlined_call_operand.vmem [shape: f32[2,4,1], index: 5, kind: output, shape index: {}]
  %s6 = sld [smem:[#allocation0]]
  $region61: #{tpu_custom_call.1} parent=0
    _
  %s8 = ssub.s32 1, %s6
  %s9 = scalar_select 0, %s8, %s6
  loop: start=0, step=1, limit=4
  $region2: #{tpu_custom_call.1} parent=0 // loop_pre_header
    _
  $region3: #{tpu_custom_call.1} parent=0 // loop_header
    %s11 = sphi 0, %s15
    %p12 = scmp.ge.s32.totalorder %s11, 4
    %s18 = sphi 0, %s30
    %s19 = sphi 0, %s26
    %s20 = sphi 0, %s18
    %s21 = sphi 0, %s19
    %s22 = sphi 0, %s20
    %s23 = sphi 0, %s21
    %s35 = sphi 0, %s37
    %s38 = sphi 0, %s35
    %s39 = sphi 0, %s38
    %s55 = sphi 0, %s39
    %s59 = sphi 0, %s59
    %s61 = sphi 0, %s59
    %s62 = sphi 0, %s61
    %s76 = sphi 0, %s62
    %s80 = sphi 0, %s80
    %s82 = sphi 0, %s80
    %s83 = sphi 0, %s82
    %s97 = sphi 0, %s83
    %s101 = sphi 0, %s101
    %s103 = sphi 0, %s101
    %s104 = sphi 0, %s103
    %s118 = sphi 0, %s104
    %s122 = sphi 0, %s122
    %s124 = sphi 0, %s122
    %s125 = sphi 0, %s124
    %s139 = sphi 0, %s125
    %s145 = sphi 0, %s147
    %s148 = sphi 0, %s145
    %s149 = sphi 0, %s148
    %s165 = sphi 0, %s149
  $region4: #{tpu_custom_call.1} parent=0 // loop_header_branch
    %14 = sbr.rel (%p12) target = $region8
  $region5: #{tpu_custom_call.1} parent=0 // loop_body
    %s16 = ssub.s32 %s11, 1
    %s17 = ssub.s32 %s11, 2
    %s24 = sadd.s32 1, %s19
    %p25 = scmp.ge.s32.totalorder %s24, 1
    %s26 = scalar_select %p25, 0, %s24
    %s27 = sadd.s32 1, %s18
    %s28 = scalar_select %p25, %s27, %s18
    %p29 = scmp.ge.s32.totalorder %s28, 2
    %s30 = scalar_select %p29, 0, %s28
    %s31 = ssub.s32 %s18, %s30
    %s32 = ssub.s32 %s19, %s26
    %s33 = sor.u32 %s31, %s32
    %p34 = scmp.eq.s32.totalorder %s33, 0
    %s36 = sadd.s32 %s35, 1
    %s37 = scalar_select %p34, %s35, %s36
    %p40 = pneg %p34
    %p41 = scmp.eq.s32.totalorder %s11, 1
    %p42 = por %p40, %p41
    %p43 = scmp.ne.s32.totalorder %s35, %s38
    %p44 = scmp.eq.s32.totalorder %s11, 0
    %p45 = por %p43, %p44
    %p46 = scmp.ne.s32.totalorder %s35, %s38
    %p47 = scmp.eq.s32.totalorder %s16, 1
    %p48 = por %p46, %p47
    %p49 = scmp.ne.s32.totalorder %s38, %s39
    %p50 = scmp.eq.s32.totalorder %s16, 0
    %p51 = por %p49, %p50
    %p52 = scmp.ne.s32.totalorder %s38, %s39
    %p53 = scmp.eq.s32.totalorder %s17, 1
    %p54 = por %p52, %p53
    %p56 = scmp.ne.s32.totalorder %s39, %s55
    %p57 = scmp.eq.s32.totalorder %s17, 0
    %p58 = por %p56, %p57
    %s60 = sadd.s32 %s59, 1
    %p63 = scmp.eq.s32.totalorder %s11, 1
    %p64 = scmp.ne.s32.totalorder %s59, %s61
    %p65 = scmp.eq.s32.totalorder %s11, 0
    %p66 = por %p64, %p65
    %p67 = scmp.ne.s32.totalorder %s59, %s61
    %p68 = scmp.eq.s32.totalorder %s16, 1
    %p69 = por %p67, %p68
    %p70 = scmp.ne.s32.totalorder %s61, %s62
    %p71 = scmp.eq.s32.totalorder %s16, 0
    %p72 = por %p70, %p71
    %p73 = scmp.ne.s32.totalorder %s61, %s62
    %p74 = scmp.eq.s32.totalorder %s17, 1
    %p75 = por %p73, %p74
    %p77 = scmp.ne.s32.totalorder %s62, %s76
    %p78 = scmp.eq.s32.totalorder %s17, 0
    %p79 = por %p77, %p78
    %s81 = sadd.s32 %s80, 1
    %p84 = scmp.eq.s32.totalorder %s11, 1
    %p85 = scmp.ne.s32.totalorder %s80, %s82
    %p86 = scmp.eq.s32.totalorder %s11, 0
    %p87 = por %p85, %p86
    %p88 = scmp.ne.s32.totalorder %s80, %s82
    %p89 = scmp.eq.s32.totalorder %s16, 1
    %p90 = por %p88, %p89
    %p91 = scmp.ne.s32.totalorder %s82, %s83
    %p92 = scmp.eq.s32.totalorder %s16, 0
    %p93 = por %p91, %p92
    %p94 = scmp.ne.s32.totalorder %s82, %s83
    %p95 = scmp.eq.s32.totalorder %s17, 1
    %p96 = por %p94, %p95
    %p98 = scmp.ne.s32.totalorder %s83, %s97
    %p99 = scmp.eq.s32.totalorder %s17, 0
    %p100 = por %p98, %p99
    %s102 = sadd.s32 %s101, 1
    %p105 = scmp.eq.s32.totalorder %s11, 1
    %p106 = scmp.ne.s32.totalorder %s101, %s103
    %p107 = scmp.eq.s32.totalorder %s11, 0
    %p108 = por %p106, %p107
    %p109 = scmp.ne.s32.totalorder %s101, %s103
    %p110 = scmp.eq.s32.totalorder %s16, 1
    %p111 = por %p109, %p110
    %p112 = scmp.ne.s32.totalorder %s103, %s104
    %p113 = scmp.eq.s32.totalorder %s16, 0
    %p114 = por %p112, %p113
    %p115 = scmp.ne.s32.totalorder %s103, %s104
    %p116 = scmp.eq.s32.totalorder %s17, 1
    %p117 = por %p115, %p116
    %p119 = scmp.ne.s32.totalorder %s104, %s118
    %p120 = scmp.eq.s32.totalorder %s17, 0
    %p121 = por %p119, %p120
    %s123 = sadd.s32 %s122, 1
    %p126 = scmp.eq.s32.totalorder %s11, 1
    %p127 = scmp.ne.s32.totalorder %s122, %s124
    %p128 = scmp.eq.s32.totalorder %s11, 0
    %p129 = por %p127, %p128
    %p130 = scmp.ne.s32.totalorder %s122, %s124
    %p131 = scmp.eq.s32.totalorder %s16, 1
    %p132 = por %p130, %p131
    %p133 = scmp.ne.s32.totalorder %s124, %s125
    %p134 = scmp.eq.s32.totalorder %s16, 0
    %p135 = por %p133, %p134
    %p136 = scmp.ne.s32.totalorder %s124, %s125
    %p137 = scmp.eq.s32.totalorder %s17, 1
    %p138 = por %p136, %p137
    %p140 = scmp.ne.s32.totalorder %s125, %s139
    %p141 = scmp.eq.s32.totalorder %s17, 0
    %p142 = por %p140, %p141
    %s143 = ssub.s32 %s18, %s30
    %p144 = scmp.eq.s32.totalorder %s143, 0
    %s146 = sadd.s32 %s145, 1
    %s147 = scalar_select %p144, %s145, %s146
    %p150 = pneg %p144
    %p151 = scmp.eq.s32.totalorder %s11, 1
    %p152 = por %p150, %p151
    %p153 = scmp.ne.s32.totalorder %s145, %s148
    %p154 = scmp.eq.s32.totalorder %s11, 0
    %p155 = por %p153, %p154
    %p156 = scmp.ne.s32.totalorder %s145, %s148
    %p157 = scmp.eq.s32.totalorder %s16, 1
    %p158 = por %p156, %p157
    %p159 = scmp.ne.s32.totalorder %s148, %s149
    %p160 = scmp.eq.s32.totalorder %s16, 0
    %p161 = por %p159, %p160
    %p162 = scmp.ne.s32.totalorder %s148, %s149
    %p163 = scmp.eq.s32.totalorder %s17, 1
    %p164 = por %p162, %p163
    %p166 = scmp.ne.s32.totalorder %s149, %s165
    %p167 = scmp.eq.s32.totalorder %s17, 0
    %p168 = por %p166, %p167
    %p169 = scmp.le.s32.totalorder 1, %s11
    %p170 = scmp.lt.s32.totalorder %s11, 3
    %p171 = pnand %p169, %p170
    %p172 = pneg %p171
    // Predicated region
    $region9: #{tpu_custom_call.1} parent=5 // pred_check
      _
    $region10: #{tpu_custom_call.1} parent=5 // pred_check_branch
      %174 = sbr.rel (%p171) target = $region12
    $region11: #{tpu_custom_call.1} parent=5 // pred_region
      %s175 = ssub.s32 %s11, 1
      // Predicated region
      $region13: #{tpu_custom_call.1} parent=11 // pred_check
        %p176 = pneg %p72
      $region14: #{tpu_custom_call.1} parent=11 // pred_check_branch
        %178 = sbr.rel (%p176) target = $region16
      $region15: #{tpu_custom_call.1} parent=11 // pred_region
        _
      $region16: #{tpu_custom_call.1} parent=11 // pred_fallthru
        _
      // Predicated region
      $region17: #{tpu_custom_call.1} parent=11 // pred_check
        %p179 = pneg %p93
      $region18: #{tpu_custom_call.1} parent=11 // pred_check_branch
        %181 = sbr.rel (%p179) target = $region20
      $region19: #{tpu_custom_call.1} parent=11 // pred_region
        _
      $region20: #{tpu_custom_call.1} parent=11 // pred_fallthru
        _
      // Predicated region
      $region21: #{tpu_custom_call.1} parent=11 // pred_check
        %p182 = pneg %p114
      $region22: #{tpu_custom_call.1} parent=11 // pred_check_branch
        %184 = sbr.rel (%p182) target = $region24
      $region23: #{tpu_custom_call.1} parent=11 // pred_region
        _
      $region24: #{tpu_custom_call.1} parent=11 // pred_fallthru
        _
      // Predicated region
      $region25: #{tpu_custom_call.1} parent=11 // pred_check
        %p185 = pneg %p135
      $region26: #{tpu_custom_call.1} parent=11 // pred_check_branch
        %187 = sbr.rel (%p185) target = $region28
      $region27: #{tpu_custom_call.1} parent=11 // pred_region
        _
      $region28: #{tpu_custom_call.1} parent=11 // pred_fallthru
        _
    $region12: #{tpu_custom_call.1} parent=5 // pred_fallthru
      _
    %p188 = scmp.lt.s32.totalorder %s11, 2
    // Predicated region
    $region29: #{tpu_custom_call.1} parent=5 // pred_check
      %p189 = pneg %p188
    $region30: #{tpu_custom_call.1} parent=5 // pred_check_branch
      %191 = sbr.rel (%p189) target = $region32
    $region31: #{tpu_custom_call.1} parent=5 // pred_region
      // Predicated region
      $region33: #{tpu_custom_call.1} parent=31 // pred_check
        %p192 = pneg %p45
      $region34: #{tpu_custom_call.1} parent=31 // pred_check_branch
        %194 = sbr.rel (%p192) target = $region36
      $region35: #{tpu_custom_call.1} parent=31 // pred_region
        %s195 = smul.u32 2, %s19
        %p196 = scmp.lt.s32.totalorder %s18, 1
        %s197 = scalar_select %p196, %s18, 1
        %p198 = scmp.lt.s32.totalorder %s195, 1
        %s199 = scalar_select %p198, %s195, 1
        %s200 = smul.addr %s197, 2
        %s201 = sadd.s32 %s199, %s200
        %s202 = smul.addr %s201, 4
        %s203 = scalar_lea.vmem %s0, %s202
        %s204 = smul.u32 2, %s19
      $region36: #{tpu_custom_call.1} parent=31 // pred_fallthru
        _
    $region32: #{tpu_custom_call.1} parent=5 // pred_fallthru
      _
    %p205 = scmp.le.s32.totalorder 1, %s11
    %p206 = scmp.lt.s32.totalorder %s11, 3
    %p207 = pnand %p205, %p206
    %p208 = pneg %p207
    // Predicated region
    $region37: #{tpu_custom_call.1} parent=5 // pred_check
      _
    $region38: #{tpu_custom_call.1} parent=5 // pred_check_branch
      %210 = sbr.rel (%p207) target = $region40
    $region39: #{tpu_custom_call.1} parent=5 // pred_region
      %s211 = ssub.s32 %s11, 1
      %s212 = smul.u32 2, %s21
      %p213 = scmp.lt.s32.totalorder %s20, 1
      %s214 = scalar_select %p213, %s20, 1
      %p215 = scmp.lt.s32.totalorder %s212, 1
      %s216 = scalar_select %p215, %s212, 1
      %s217 = smul.addr %s214, 2
      %s218 = sadd.s32 %s216, %s217
      %s219 = smul.addr %s218, 4
      %s220 = scalar_lea.vmem %s0, %s219
      %p221 = pneg %p51
      %p222 = pneg %p48
      %p223 = pneg %p72
      %p224 = pneg %p69
      %p225 = pneg %p93
      %p226 = pneg %p90
      %p227 = pneg %p114
      %p228 = pneg %p111
      %p229 = pneg %p135
      %p230 = pneg %p132
      %p231 = pneg %p161
      %p232 = pneg %p158
      %p233 = scmp.lt.s32.totalorder %s20, 1
      %s234 = scalar_select %p233, %s20, 1
      %s235 = smul.addr %s234, 4
      %s236 = scalar_lea.vmem %s5, %s235
      %s237 = smul.u32 2, %s21
      %p238 = scmp.lt.s32.totalorder %s20, 1
      %s239 = scalar_select %p238, %s20, 1
      %p240 = scmp.lt.s32.totalorder %s237, 1
      %s241 = scalar_select %p240, %s237, 1
      %s242 = smul.addr %s239, 2
      %s243 = sadd.s32 %s241, %s242
      %s244 = smul.addr %s243, 4
      %s245 = scalar_lea.vmem %s0, %s244
      %s246 = smul.u32 2, %s21
      %p247 = scmp.lt.s32.totalorder %s20, 1
      %s248 = scalar_select %p247, %s20, 1
      %s249 = smul.addr %s248, 4
      %s250 = scalar_lea.vmem %s5, %s249
      %p251 = scmp.eq.s32.totalorder %s21, 0
      // Predicated region
      $region41: #{tpu_custom_call.1} parent=39 // pred_check
        %p252 = pneg %p251
      $region42: #{tpu_custom_call.1} parent=39 // pred_check_branch
        %254 = sbr.rel (%p252) target = $region44
      $region43: #{tpu_custom_call.1} parent=39 // pred_region
        %vm255 = vcmask 3072
        %256 = vst.msk [vmem:[#allocation2] sm:$0xf] %vm255, 0.0
      $region44: #{tpu_custom_call.1} parent=39 // pred_fallthru
        _
      %v257 = vld [vmem:[#allocation2] sm:$0xf]
      %v258 = vld [vmem:[%s245] sm:$0xff]
      %v260 = vcombine.high %v258, %v258
      %vm262 = vcmask 1043456
      %v263 = vsel %vm262, %v258, 0.0
      %v264 = vsel %vm262, %v260, 0.0
      %v265 = vadd.f32 %v263, %v264
      %266 = vadd.xlane.f32.xlu0 %v265
      %v267 = vpop.xlane.xlu0 %266
      %v268 = vadd.f32 %v257, %v267
      %vm269 = vcmask 3072
      %270 = vst.msk [vmem:[#allocation2] sm:$0xf] %vm269, %v268
      // Predicated region
      $region45: #{tpu_custom_call.1} parent=39 // pred_check
        %p271 = pneg %p251
      $region46: #{tpu_custom_call.1} parent=39 // pred_check_branch
        %273 = sbr.rel (%p271) target = $region48
      $region47: #{tpu_custom_call.1} parent=39 // pred_region
        %v274 = vld [vmem:[#allocation2] sm:$0xf]
        %v275 = vmul.f32 %v274, 0.00390625
        %v276 = vmul.f32 %v275, %v275
        %v277 = vmul.f32 %v276, %v275
        %v279 = vrot.slane %v276, 4
        %v281 = vsel %vm262, %v275, %v279
        %v282 = vld [vmem:[%s2] sm:$0x1]
        %v283 = vld [vmem:[%s1] sm:$0xff]
        %v284 = vld [vmem:[%s1 + $0x8] sm:$0xf]
        %286 = vset.pattern.permute.xlu0 0
        %287 = vperm.xlu0 %286, %v281
        %v288 = vpop.permute.xlu0 %287
        %291 = vset.pattern.permute.xlu0 0
        %292 = vperm.xlu0 %291, %v277
        %v293 = vpop.permute.xlu0 %292
        %v295 = vmul.f32 %v283, %v288
        %v296 = vmul.f32 %v284, %v293
        %vm297 = vcmask 15360
        %v298 = vsel %vm297, %v295, 0.0
        %vm299 = vcmask 11264
        %v300 = vsel %vm299, %v296, 0.0
        %v301 = vadd.f32 %v298, %v300
        %v302 = vrot.slane %v301, 4
        %v303 = vadd.f32 %v301, %v302
        %v304 = vrot.slane %v303, 2
        %v305 = vadd.f32 %v303, %v304
        %v306 = vrot.slane %v305, 1
        %v307 = vadd.f32 %v305, %v306
        %v308 = vadd.f32 %v282, %v307
        %v309 = vtanh.pop %v308
        %v310 = vmul.f32 %v309, %v309
        %v311 = vmul.f32 %v310, %v309
        %v313 = vlaneseq
        %v314 = vshrl.u32 %v313, 7
        %v315 = vsub.s32 0, %v314
        %v316 = vrot.slane %v310, %v315
        %317 = vrot.lane.b32.xlu0 %v316, 2
        %v318 = vpop.permute.xlu0 %317
        %v321 = vlaneseq
        %v322 = vshrl.u32 %v321, 7
        %v323 = vsub.s32 0, %v322
        %v324 = vrot.slane %v311, %v323
        %325 = vrot.lane.b32.xlu0 %v324, 4
        %v326 = vpop.permute.xlu0 %325
        %v328 = vsel %vm297, %v309, %v318
        %vm329 = vcmask 31744
        %v330 = vsel %vm329, %v328, %v326
        %v331 = vld [vmem:[%s4] sm:$0xf]
        %v332 = vld [vmem:[%s3] sm:$0xf]
        %v333 = vlaneseq
        %v334 = vshrl.u32 %v333, 7
        %v335 = vsub.s32 0, %v334
        %v336 = vrot.slane %v330, %v335
        %v337 = vmul.f32 %v332, %v336
        %vm338 = vcmask 44032
        %v339 = vsel %vm338, %v337, 0.0
        %340 = vadd.xlane.f32.xlu0 %v339
        %v341 = vpop.xlane.xlu0 %340
        %v342 = vadd.f32 %v331, %v341
        %v343 = vxor.u32 %v342, 2147483648
        %v344 = vmul.f32 %v343, 1.442695
        %v345 = vpow.pop %v344
        %v346 = vadd.f32 %v345, 1.0
        %v347 = vrcp.pop %v346
        %v348 = vmul.f32 1.0, %v347
        %349 = vst.msk [vmem:[%s250] sm:$0xf] %vm269, %v348
      $region48: #{tpu_custom_call.1} parent=39 // pred_fallthru
        _
      %p350 = scmp.lt.s32.totalorder %s20, 1
      %s351 = scalar_select %p350, %s20, 1
      %s352 = smul.addr %s351, 4
      %s353 = scalar_lea.vmem %s5, %s352
      // Predicated region
      $region49: #{tpu_custom_call.1} parent=39 // pred_check
        %p354 = pneg %p158
      $region50: #{tpu_custom_call.1} parent=39 // pred_check_branch
        %356 = sbr.rel (%p354) target = $region52
      $region51: #{tpu_custom_call.1} parent=39 // pred_region
        _
      $region52: #{tpu_custom_call.1} parent=39 // pred_fallthru
        _
    $region40: #{tpu_custom_call.1} parent=5 // pred_fallthru
      _
    %p357 = scmp.le.s32.totalorder 2, %s11
    // Predicated region
    $region53: #{tpu_custom_call.1} parent=5 // pred_check
      %p358 = pneg %p357
    $region54: #{tpu_custom_call.1} parent=5 // pred_check_branch
      %360 = sbr.rel (%p358) target = $region56
    $region55: #{tpu_custom_call.1} parent=5 // pred_region
      %s361 = ssub.s32 %s11, 2
      // Predicated region
      $region57: #{tpu_custom_call.1} parent=55 // pred_check
        %p362 = pneg %p164
      $region58: #{tpu_custom_call.1} parent=55 // pred_check_branch
        %364 = sbr.rel (%p362) target = $region60
      $region59: #{tpu_custom_call.1} parent=55 // pred_region
        %p365 = scmp.lt.s32.totalorder %s22, 1
        %s366 = scalar_select %p365, %s22, 1
        %s367 = smul.addr %s366, 4
        %s368 = scalar_lea.vmem %s5, %s367
      $region60: #{tpu_custom_call.1} parent=55 // pred_fallthru
        _
    $region56: #{tpu_custom_call.1} parent=5 // pred_fallthru
      _
  $region6: #{tpu_custom_call.1} parent=0 // loop_footer
    %s15 = sadd.s32 1, %s11
  $region7: #{tpu_custom_call.1} parent=0 // loop_footer_branch
    %10 = sbr.rel target = $region3
  $region8: #{tpu_custom_call.1} parent=0 // loop_exit
    _

</llo_original>
